<compile_context>
chip_gen: v7x
topology: tpu7x:2x2x1
jax: 0.10.0
libtpu: 0.0.40
codegen_flags: <defaults>
</compile_context>

<pallas_src>
import functools
import math

import jax
import jax.numpy as jnp
from jax import lax
from jax.experimental import pallas as pl
from jax.experimental.pallas import tpu as pltpu

EPS = 1e-5  # PyTorch F.layer_norm default


# ----------------------------------------------------------------------------
# Device-derived VMEM budgets / TensorCore count.
# ----------------------------------------------------------------------------
def _device_info():
    """Returns (vmem_physical_bytes, num_tensorcores_per_device)."""
    vmem_bytes = 64 * 1024 * 1024  # conservative default (v7x per-TC VMEM)
    num_tc = 1
    try:
        info = pltpu.get_tpu_info()
        v = getattr(info, "vmem_capacity_bytes", None)
        if v:
            vmem_bytes = int(v)
        for attr in ("num_cores", "num_tensorcores", "tensorcore_count", "cores_per_chip"):
            c = getattr(info, attr, None)
            if c:
                num_tc = max(num_tc, int(c))
                break
    except Exception:
        pass
    try:
        kind = jax.devices()[0].device_kind.lower()
        # 2 TensorCores per device on v4/v5p megacore and v7x parts.
        if ("v4" in kind) or ("v5p" in kind) or ("v7" in kind) or ("7x" in kind):
            num_tc = max(num_tc, 2)
    except Exception:
        pass
    return vmem_bytes, num_tc


def _vmem_budgets():
    physical, num_tc = _device_info()
    # 128 MiB parts -> 96 MiB limit / 48 MiB tile budget.
    #  64 MiB parts -> 40 MiB limit / 20 MiB tile budget (headroom for compiler scratch).
    limit = min((physical * 3) // 4, physical - 24 * 1024 * 1024)
    limit = max(limit, 16 * 1024 * 1024)
    tile_budget = limit // 2
    return limit, tile_budget, num_tc


def _sublane_packing(dtype):
    # Sub-32-bit dtypes pack along sublanes: 8 rows/vreg for 4-byte types,
    # 16 for 2-byte (bf16/f16), 32 for 1-byte (int8/fp8).
    itemsize = jnp.dtype(dtype).itemsize
    return {4: 8, 2: 16, 1: 32}.get(itemsize, 8)


# ----------------------------------------------------------------------------
# Kernels.
# ----------------------------------------------------------------------------
def _layernorm_kernel(x_ref, w_ref, o_ref):
    """Plain path: x_ref (tm, H), w_ref (1, H), o_ref (tm, H)."""
    x = x_ref[...].astype(jnp.float32)
    mean = jnp.mean(x, axis=-1, keepdims=True)
    xc = x - mean
    # Centered two-pass variance (keep numerics; do NOT switch to E[x^2]-mean^2).
    var = jnp.mean(xc * xc, axis=-1, keepdims=True)
    inv = lax.rsqrt(var + EPS)            # EUP rsqrt
    o_ref[...] = (xc * inv * w_ref[...].astype(jnp.float32)).astype(o_ref.dtype)


def _layernorm_folded_kernel(x_ref, w_ref, o_ref, *, H, k):
    """Lane-dense path for H % 128 != 0.

    Each VMEM row packs k logical rows of length H along the lane dim:
    x_ref (tm, k*H), w_ref (1, k*H) (weight tiled k times), o_ref (tm, k*H).
    Per-logical-row reductions are segmented reductions along the lane dim,
    done as small MXU matmuls against a segment one-hot matrix (no masked
    stores, no cross-lane reshapes).
    """
    x = x_ref[...].astype(jnp.float32)
    kh = k * H
    # Segment one-hot S (kh, k): S[l, c] = 1 iff lane l belongs to segment c.
    lane = lax.broadcasted_iota(jnp.int32, (kh, k), 0)
    col = lax.broadcasted_iota(jnp.int32, (kh, k), 1)
    seg = ((lane >= col * H) & (lane < (col + 1) * H)).astype(jnp.float32)
    # Its "transpose" ST (k, kh), built directly from iota (no XLU transpose).
    lane_t = lax.broadcasted_iota(jnp.int32, (k, kh), 1)
    row_t = lax.broadcasted_iota(jnp.int32, (k, kh), 0)
    seg_t = ((lane_t >= row_t * H) & (lane_t < (row_t + 1) * H)).astype(jnp.float32)

    inv_h = jnp.float32(1.0 / H)
    mean_seg = jnp.dot(x, seg, preferred_element_type=jnp.float32) * inv_h        # (tm, k)
    mean = jnp.dot(mean_seg, seg_t, preferred_element_type=jnp.float32)           # (tm, kh)
    xc = x - mean
    var_seg = jnp.dot(xc * xc, seg, preferred_element_type=jnp.float32) * inv_h   # (tm, k)
    inv_seg = lax.rsqrt(var_seg + EPS)
    inv = jnp.dot(inv_seg, seg_t, preferred_element_type=jnp.float32)             # (tm, kh)
    o_ref[...] = (xc * inv * w_ref[...].astype(jnp.float32)).astype(o_ref.dtype)


# ----------------------------------------------------------------------------
# Tile selection.
# ----------------------------------------------------------------------------
def _choose_row_tile(n_rows, H, dtype, requested, tile_budget, num_tc):
    packing = _sublane_packing(dtype)
    if n_rows <= packing:
        # Single block equal to the full array (exempt from (8,128) divisibility).
        return n_rows

    itemsize = jnp.dtype(dtype).itemsize
    # Per-row footprint: in + out (double-buffered) in the input dtype, plus
    # ~2 full-tile f32 temporaries for the centered two-pass f32 path.
    bytes_per_row = H * (2 * 2 * itemsize + 2 * 4)
    max_rows_by_vmem = max(packing, tile_budget // max(bytes_per_row, 1))
    max_rows_by_vmem = max(packing, (max_rows_by_vmem // packing) * packing)

    rows_rounded = pl.cdiv(n_rows, packing) * packing
    tile = min(requested, max_rows_by_vmem, rows_rounded)
    tile = max(packing, (tile // packing) * packing)

    if num_tc >= 2 and rows_rounded >= 2 * packing:
        # 2-TC parts (v7x/megacore): prefer an even (ideally >=4) step count so
        # ("parallel",) sharding gives both TensorCores balanced row ranges.
        min_steps = 4 if rows_rounded >= 4 * packing else 2
        steps0 = max(pl.cdiv(n_rows, tile), min_steps)
        chosen = None
        for steps in range(steps0, steps0 + 8):
            if steps % 2:
                continue
            t = pl.cdiv(pl.cdiv(n_rows, steps), packing) * packing
            t = min(t, tile)
            actual = pl.cdiv(n_rows, t)
            if actual % 2 == 0 and actual >= min_steps:
                chosen = t
                break
        if chosen is None:
            # At least split in two so the second TensorCore is not idle.
            t = pl.cdiv(pl.cdiv(n_rows, 2), packing) * packing
            chosen = max(packing, min(tile, t))
        tile = chosen
    # On single-TC chips (v5e/v6e) a forced split is pure per-step overhead:
    # keep the single full-size tile when it fits the VMEM budget.
    return tile


# ----------------------------------------------------------------------------
# Wrapper.
# ----------------------------------------------------------------------------
def layer_norm_no_bias(x, weight, *, row_tile=1024):
    """x: (..., H); weight: (H,). LayerNorm over last dim, scale by weight, no bias."""
    orig_shape = x.shape
    H = orig_shape[-1]
    assert weight.shape == (H,), f"weight shape {weight.shape} != ({H},)"

    x2 = x.reshape(-1, H)            # metadata-only: last dim preserved
    n_rows = x2.shape[0]
    itemsize = jnp.dtype(x.dtype).itemsize

    vmem_limit, tile_budget, num_tc = _vmem_budgets()

    # Lane-density fold: if H is not a multiple of 128, fold k rows into the
    # lane dim so every load/store is an unmasked, lane-dense vst.
    k = 1
    if H % 128 != 0:
        kf = math.lcm(H, 128) // H
        packing = _sublane_packing(x.dtype)
        fold_bytes_per_row = kf * H * (2 * 2 * itemsize + 2 * 4)
        if kf > 1 and n_rows % kf == 0 and fold_bytes_per_row * packing <= tile_budget:
            k = kf

    if k > 1:
        rows_eff, h_eff = n_rows // k, k * H
        x_eff = x2.reshape(rows_eff, h_eff)          # contiguous regroup, free
        w_eff = jnp.tile(weight, k).reshape(1, h_eff)
        kernel = functools.partial(_layernorm_folded_kernel, H=H, k=k)
    else:
        rows_eff, h_eff = n_rows, H
        x_eff = x2
        w_eff = weight.reshape(1, H)
        kernel = _layernorm_kernel

    # TODO(synk): rows with H so large that even a packing-height tile exceeds
    # the VMEM budget would need a two-level (column-blocked) reduction.
    tm = _choose_row_tile(rows_eff, h_eff, x.dtype, row_tile, tile_budget, num_tc)
    grid = (pl.cdiv(rows_eff, tm),)
    # No host-side padding: Pallas masks the partially out-of-bounds tail
    # block.  Safe because the reduction is strictly per-row, so garbage tail
    # rows cannot pollute valid rows and their writes are masked.

    cost = pl.CostEstimate(
        flops=7 * n_rows * H,
        transcendentals=n_rows,
        bytes_accessed=2 * n_rows * H * itemsize + H * itemsize,
    )

    out = pl.pallas_call(
        kernel,
        out_shape=jax.ShapeDtypeStruct((rows_eff, h_eff), x.dtype),
        grid_spec=pltpu.PrefetchScalarGridSpec(
            num_scalar_prefetch=0,
            grid=grid,
            in_specs=[
                pl.BlockSpec((tm, h_eff), lambda i: (i, 0)),
                pl.BlockSpec((1, h_eff), lambda i: (0, 0)),
            ],
            out_specs=pl.BlockSpec((tm, h_eff), lambda i: (i, 0)),
        ),
        compiler_params=pltpu.CompilerParams(
            dimension_semantics=("parallel",),
            vmem_limit_bytes=vmem_limit,
        ),
        cost_estimate=cost,
    )(x_eff, w_eff)

    return out.reshape(orig_shape)


# ----------------------------------------------------------------------------
# Reference + self-test.
# ----------------------------------------------------------------------------
def _reference(x, weight):
    xf = x.astype(jnp.float32)
    mean = jnp.mean(xf, axis=-1, keepdims=True)
    var = jnp.mean((xf - mean) ** 2, axis=-1, keepdims=True)
    y = (xf - mean) * lax.rsqrt(var + EPS) * weight.astype(jnp.float32)
    return y.astype(x.dtype)


if __name__ == "__main__":
    # 1) Small-H path (H=32 < 128): exercises the lane-density fold (k=4).
    key = jax.random.PRNGKey(0)
    B, S, H = 2, 8, 32
    x = jax.random.normal(key, (B, S, H), dtype=jnp.float32)
    weight = jnp.ones((H,), dtype=jnp.float32)  # nn.Parameter(torch.ones(H))

    out = jax.block_until_ready(layer_norm_no_bias(x, weight))
    ref = _reference(x, weight)
    assert out.shape == x.shape and out.dtype == x.dtype
    assert jnp.allclose(out, ref, atol=1e-5, rtol=1e-5), "mismatch vs reference (f32, H=32)"

    # 2) Lane-aligned H (256), bf16, multi-step grid with a partial tail block.
    k2, k3 = jax.random.split(jax.random.PRNGKey(1))
    H2 = 256
    x2 = jax.random.normal(k2, (44, H2), dtype=jnp.bfloat16)
    w2 = (1.0 + 0.1 * jax.random.normal(k3, (H2,), dtype=jnp.float32)).astype(jnp.bfloat16)
    out2 = jax.block_until_ready(layer_norm_no_bias(x2, w2, row_tile=16))
    ref2 = _reference(x2, w2)
    assert out2.shape == x2.shape and out2.dtype == x2.dtype
    assert jnp.allclose(out2.astype(jnp.float32), ref2.astype(jnp.float32),
                        atol=2e-2, rtol=2e-2), "mismatch vs reference (bf16, H=256, tail block)"

    print("KERNEL_OK")
</pallas_src>

<mosaic_0001>
module attributes {stable_mosaic.version = 11 : i64} {
  func.func @_layernorm_folded_kernel(%arg0: i32, %arg1: memref<4x128xf32, #tpu.memory_space<vmem>>, %arg2: memref<1x128xf32, #tpu.memory_space<vmem>>, %arg3: memref<4x128xf32, #tpu.memory_space<vmem>>) attributes {dimension_semantics = [#tpu.dimension_semantics<parallel>], iteration_bounds = array<i64: 1>, scalar_prefetch = 0 : i64, scratch_operands = 0 : i64, tpu.core_type = #tpu.core_type<tc>, window_params = [{transform_indices = @transform_0, window_bounds = array<i64: 4, 128>}, {pipeline_mode = #tpu.pipeline_mode<synchronous>, transform_indices = @transform_1, window_bounds = array<i64: 1, 128>}, {transform_indices = @transform_2, window_bounds = array<i64: 4, 128>}]} {
    %c0 = arith.constant 0 : index
    %c0_0 = arith.constant 0 : index
    %0 = vector.load %arg1[%c0, %c0_0] : memref<4x128xf32, #tpu.memory_space<vmem>>, vector<4x128xf32>
    %1 = tpu.iota {dimensions = array<i32: 0>} : vector<128x4xi32>
    %2 = tpu.iota {dimensions = array<i32: 1>} : vector<128x4xi32>
    %c32_i32 = arith.constant 32 : i32
    %3 = vector.broadcast %c32_i32 : i32 to vector<128x4xi32>
    %4 = arith.muli %2, %3 : vector<128x4xi32>
    %5 = arith.cmpi sge, %1, %4 : vector<128x4xi32>
    %c1_i32 = arith.constant 1 : i32
    %6 = vector.broadcast %c1_i32 : i32 to vector<128x4xi32>
    %7 = arith.addi %2, %6 : vector<128x4xi32>
    %c32_i32_1 = arith.constant 32 : i32
    %8 = vector.broadcast %c32_i32_1 : i32 to vector<128x4xi32>
    %9 = arith.muli %7, %8 : vector<128x4xi32>
    %10 = arith.cmpi slt, %1, %9 : vector<128x4xi32>
    %11 = arith.andi %5, %10 : vector<128x4xi1>
    %12 = arith.extui %11 : vector<128x4xi1> to vector<128x4xi32>
    %13 = arith.sitofp %12 : vector<128x4xi32> to vector<128x4xf32>
    %14 = tpu.iota {dimensions = array<i32: 1>} : vector<4x128xi32>
    %15 = tpu.iota {dimensions = array<i32: 0>} : vector<4x128xi32>
    %c32_i32_2 = arith.constant 32 : i32
    %16 = vector.broadcast %c32_i32_2 : i32 to vector<4x128xi32>
    %17 = arith.muli %15, %16 : vector<4x128xi32>
    %18 = arith.cmpi sge, %14, %17 : vector<4x128xi32>
    %c1_i32_3 = arith.constant 1 : i32
    %19 = vector.broadcast %c1_i32_3 : i32 to vector<4x128xi32>
    %20 = arith.addi %15, %19 : vector<4x128xi32>
    %c32_i32_4 = arith.constant 32 : i32
    %21 = vector.broadcast %c32_i32_4 : i32 to vector<4x128xi32>
    %22 = arith.muli %20, %21 : vector<4x128xi32>
    %23 = arith.cmpi slt, %14, %22 : vector<4x128xi32>
    %24 = arith.andi %18, %23 : vector<4x128xi1>
    %25 = arith.extui %24 : vector<4x128xi1> to vector<4x128xi32>
    %26 = arith.sitofp %25 : vector<4x128xi32> to vector<4x128xf32>
    %cst = arith.constant dense<0.000000e+00> : vector<4x4xf32>
    %27 = tpu.matmul %0, %13, %cst {dimension_numbers = #tpu.dot_dimension_numbers<[1], [0], [0], [1], [0, 0, 1, 1], [], []>} : vector<4x128xf32>, vector<128x4xf32>, vector<4x4xf32> -> vector<4x4xf32>
    %cst_5 = arith.constant 3.125000e-02 : f32
    %28 = vector.broadcast %cst_5 : f32 to vector<4x4xf32>
    %29 = arith.mulf %27, %28 : vector<4x4xf32>
    %cst_6 = arith.constant dense<0.000000e+00> : vector<4x128xf32>
    %30 = tpu.matmul %29, %26, %cst_6 {dimension_numbers = #tpu.dot_dimension_numbers<[1], [0], [0], [1], [0, 0, 1, 1], [], []>} : vector<4x4xf32>, vector<4x128xf32>, vector<4x128xf32> -> vector<4x128xf32>
    %31 = arith.subf %0, %30 : vector<4x128xf32>
    %32 = arith.mulf %31, %31 : vector<4x128xf32>
    %cst_7 = arith.constant dense<0.000000e+00> : vector<4x4xf32>
    %33 = tpu.matmul %32, %13, %cst_7 {dimension_numbers = #tpu.dot_dimension_numbers<[1], [0], [0], [1], [0, 0, 1, 1], [], []>} : vector<4x128xf32>, vector<128x4xf32>, vector<4x4xf32> -> vector<4x4xf32>
    %cst_8 = arith.constant 3.125000e-02 : f32
    %34 = vector.broadcast %cst_8 : f32 to vector<4x4xf32>
    %35 = arith.mulf %33, %34 : vector<4x4xf32>
    %cst_9 = arith.constant 9.99999974E-6 : f32
    %36 = vector.broadcast %cst_9 : f32 to vector<4x4xf32>
    %37 = arith.addf %35, %36 : vector<4x4xf32>
    %38 = math.rsqrt %37 : vector<4x4xf32>
    %cst_10 = arith.constant dense<0.000000e+00> : vector<4x128xf32>
    %39 = tpu.matmul %38, %26, %cst_10 {dimension_numbers = #tpu.dot_dimension_numbers<[1], [0], [0], [1], [0, 0, 1, 1], [], []>} : vector<4x4xf32>, vector<4x128xf32>, vector<4x128xf32> -> vector<4x128xf32>
    %40 = arith.mulf %31, %39 : vector<4x128xf32>
    %c0_11 = arith.constant 0 : index
    %c0_12 = arith.constant 0 : index
    %41 = vector.load %arg2[%c0_11, %c0_12] : memref<1x128xf32, #tpu.memory_space<vmem>>, vector<1x128xf32>
    %42 = vector.broadcast %41 : vector<1x128xf32> to vector<4x128xf32>
    %43 = arith.mulf %40, %42 : vector<4x128xf32>
    %c0_13 = arith.constant 0 : index
    %c0_14 = arith.constant 0 : index
    %44 = vector.load %arg3[%c0_13, %c0_14] : memref<4x128xf32, #tpu.memory_space<vmem>>, vector<4x128xf32>
    tpu.vector_store %arg3[%c0_13, %c0_14], %43 {strides = array<i32>} : memref<4x128xf32, #tpu.memory_space<vmem>>, vector<4x128xf32>,
    return
  }
  func.func @transform_0(%arg0: i32) -> (i32, i32) {
    %c0_i32 = arith.constant 0 : i32
    %c0_i32_0 = arith.constant 0 : i32
    return %arg0, %c0_i32 : i32, i32
  }
  func.func @transform_1(%arg0: i32) -> (i32, i32) {
    %c0_i32 = arith.constant 0 : i32
    %c0_i32_0 = arith.constant 0 : i32
    %c0_i32_1 = arith.constant 0 : i32
    return %c0_i32, %c0_i32_0 : i32, i32
  }
  func.func @transform_2(%arg0: i32) -> (i32, i32) {
    %c0_i32 = arith.constant 0 : i32
    %c0_i32_0 = arith.constant 0 : i32
    return %arg0, %c0_i32 : i32, i32
  }
}

</mosaic_0001>

<llo_original>
// kernel: tpu_custom_call.1
$region0: #{tpu_custom_call.1}
  #allocation0 [shape = 'u32[]', space=smem, size = 0x4, offset = 0x4, fixed_abs, tag = 'smem constant byte address 0x4 - core index']
  #allocation1 [shape = 'u32[144,128]{1,0:T(1,128)}', space=vmem, size = 0x12000, scoped, tag = 'internal scratch']
  %s0 = inlined_call_operand.hbm [shape: f32[4,128], index: 0, kind: input, shape index: {}]
  %s1 = inlined_call_operand.vmem [shape: f32[1,128], index: 1, kind: input, shape index: {}]
  %s2 = inlined_call_operand.hbm [shape: f32[4,128], index: 2, kind: output, shape index: {}]
  %s3 = sld [smem:[#allocation0]]
  $region22: #{tpu_custom_call.1} parent=0
    _
  %s5 = ssub.s32 1, %s3
  %s6 = scalar_select 0, %s5, %s3
  $region1: #{tpu_custom_call.1} parent=0
    #allocation2 [shape = 'u8[2048]{0}', space=vmem, size = 0x800, scoped, tag = 'input window, operand 0, single buffered']
    #allocation3 [shape = 's32[1]{0}', space=sflag, size = 0x4, scoped, tag = 'scoped memory for tpu_custom_call.1']
    #allocation4 [shape = 's32[1]{0}', space=sflag, size = 0x4, scoped, tag = 'scoped memory for tpu_custom_call.1']
    #allocation5 [shape = 'u8[2048]{0}', space=vmem, size = 0x800, scoped, tag = 'output window, operand 0, single buffered']
    %7 = vsyncpa [#allocation3], 0
    %8 = vsyncpa [#allocation4], 0
    // Predicated region
    $region2: #{tpu_custom_call.1} parent=1 // pred_check
      _
    $region3: #{tpu_custom_call.1} parent=1 // pred_check_branch
      %10 = sbr.rel (0) target = $region5
    $region4: #{tpu_custom_call.1} parent=1 // pred_region
      %s12 = ssub.s32 64, 64
      %13 = vsyncadd [#allocation3], %s12
      %s15 = sshll.u32 [#allocation2], 4
      %s16 = int_to_ptr.vmem [resolvable:$true] %s15
      %18 = dma.hbm_to_vmem [thread:$0]  %s0, 64, %s16, [#allocation3]
    $region5: #{tpu_custom_call.1} parent=1 // pred_fallthru
      _
    // Predicated region
    $region6: #{tpu_custom_call.1} parent=1 // pred_check
      _
    $region7: #{tpu_custom_call.1} parent=1 // pred_check_branch
      %20 = sbr.rel (0) target = $region9
    $region8: #{tpu_custom_call.1} parent=1 // pred_region
      _
    $region9: #{tpu_custom_call.1} parent=1 // pred_fallthru
      _
    // Predicated region
    $region10: #{tpu_custom_call.1} parent=1 // pred_check
      _
    $region11: #{tpu_custom_call.1} parent=1 // pred_check_branch
      %22 = sbr.rel (0) target = $region13
    $region12: #{tpu_custom_call.1} parent=1 // pred_region
      %23 = dma.done [#allocation3], 64
    $region13: #{tpu_custom_call.1} parent=1 // pred_fallthru
      _
    %v24 = vld [vmem:[#allocation2] sm:$0xf]
    %v25 = vlaneseq
    %v26 = vshrl.u32 %v25, 7
    %v27 = vadd.s32 %v26, 8
    %v28 = vadd.s32 %v26, 16
    %v29 = vadd.s32 %v26, 24
    %v30 = vadd.s32 %v26, 32
    %v31 = vadd.s32 %v26, 40
    %v32 = vadd.s32 %v26, 48
    %v33 = vadd.s32 %v26, 56
    %v34 = vadd.s32 %v26, 64
    %v35 = vadd.s32 %v26, 72
    %v36 = vadd.s32 %v26, 80
    %v37 = vadd.s32 %v26, 88
    %v38 = vadd.s32 %v26, 96
    %v39 = vadd.s32 %v26, 104
    %v40 = vadd.s32 %v26, 112
    %v41 = vadd.s32 %v26, 120
    %v42 = vlaneseq
    %v43 = vand.u32 %v42, 127
    %v44 = vmul.u32 %v43, 32
    %vm45 = vcmp.ge.s32.totalorder %v26, %v44
    %vm46 = vcmp.ge.s32.totalorder %v27, %v44
    %vm47 = vcmp.ge.s32.totalorder %v28, %v44
    %vm48 = vcmp.ge.s32.totalorder %v29, %v44
    %vm49 = vcmp.ge.s32.totalorder %v30, %v44
    %vm50 = vcmp.ge.s32.totalorder %v31, %v44
    %vm51 = vcmp.ge.s32.totalorder %v32, %v44
    %vm52 = vcmp.ge.s32.totalorder %v33, %v44
    %vm53 = vcmp.ge.s32.totalorder %v34, %v44
    %vm54 = vcmp.ge.s32.totalorder %v35, %v44
    %vm55 = vcmp.ge.s32.totalorder %v36, %v44
    %vm56 = vcmp.ge.s32.totalorder %v37, %v44
    %vm57 = vcmp.ge.s32.totalorder %v38, %v44
    %vm58 = vcmp.ge.s32.totalorder %v39, %v44
    %vm59 = vcmp.ge.s32.totalorder %v40, %v44
    %vm60 = vcmp.ge.s32.totalorder %v41, %v44
    %v61 = vadd.s32 %v43, 1
    %v62 = vmul.u32 %v61, 32
    %vm63 = vcmp.lt.s32.totalorder %v26, %v62
    %vm64 = vcmp.lt.s32.totalorder %v27, %v62
    %vm65 = vcmp.lt.s32.totalorder %v28, %v62
    %vm66 = vcmp.lt.s32.totalorder %v29, %v62
    %vm67 = vcmp.lt.s32.totalorder %v30, %v62
    %vm68 = vcmp.lt.s32.totalorder %v31, %v62
    %vm69 = vcmp.lt.s32.totalorder %v32, %v62
    %vm70 = vcmp.lt.s32.totalorder %v33, %v62
    %vm71 = vcmp.lt.s32.totalorder %v34, %v62
    %vm72 = vcmp.lt.s32.totalorder %v35, %v62
    %vm73 = vcmp.lt.s32.totalorder %v36, %v62
    %vm74 = vcmp.lt.s32.totalorder %v37, %v62
    %vm75 = vcmp.lt.s32.totalorder %v38, %v62
    %vm76 = vcmp.lt.s32.totalorder %v39, %v62
    %vm77 = vcmp.lt.s32.totalorder %v40, %v62
    %vm78 = vcmp.lt.s32.totalorder %v41, %v62
    %vm79 = vmand %vm45, %vm63
    %vm80 = vmand %vm46, %vm64
    %vm81 = vmand %vm47, %vm65
    %vm82 = vmand %vm48, %vm66
    %vm83 = vmand %vm49, %vm67
    %vm84 = vmand %vm50, %vm68
    %vm85 = vmand %vm51, %vm69
    %vm86 = vmand %vm52, %vm70
    %vm87 = vmand %vm53, %vm71
    %vm88 = vmand %vm54, %vm72
    %vm89 = vmand %vm55, %vm73
    %vm90 = vmand %vm56, %vm74
    %vm91 = vmand %vm57, %vm75
    %vm92 = vmand %vm58, %vm76
    %vm93 = vmand %vm59, %vm77
    %vm94 = vmand %vm60, %vm78
    %v95 = vsel %vm79, 1, 0
    %v96 = vsel %vm80, 1, 0
    %v97 = vsel %vm81, 1, 0
    %v98 = vsel %vm82, 1, 0
    %v99 = vsel %vm83, 1, 0
    %v100 = vsel %vm84, 1, 0
    %v101 = vsel %vm85, 1, 0
    %v102 = vsel %vm86, 1, 0
    %v103 = vsel %vm87, 1, 0
    %v104 = vsel %vm88, 1, 0
    %v105 = vsel %vm89, 1, 0
    %v106 = vsel %vm90, 1, 0
    %v107 = vsel %vm91, 1, 0
    %v108 = vsel %vm92, 1, 0
    %v109 = vsel %vm93, 1, 0
    %v110 = vsel %vm94, 1, 0
    %v111 = vcvt.s32.f32 %v95
    %v112 = vcvt.s32.f32 %v96
    %v113 = vcvt.s32.f32 %v97
    %v114 = vcvt.s32.f32 %v98
    %v115 = vcvt.s32.f32 %v99
    %v116 = vcvt.s32.f32 %v100
    %v117 = vcvt.s32.f32 %v101
    %v118 = vcvt.s32.f32 %v102
    %v119 = vcvt.s32.f32 %v103
    %v120 = vcvt.s32.f32 %v104
    %v121 = vcvt.s32.f32 %v105
    %v122 = vcvt.s32.f32 %v106
    %v123 = vcvt.s32.f32 %v107
    %v124 = vcvt.s32.f32 %v108
    %v125 = vcvt.s32.f32 %v109
    %v126 = vcvt.s32.f32 %v110
    %v127 = vmul.u32 %v26, 32
    %vm128 = vcmp.ge.s32.totalorder %v43, %v127
    %v129 = vadd.s32 %v26, 1
    %v130 = vmul.u32 %v129, 32
    %vm131 = vcmp.lt.s32.totalorder %v43, %v130
    %vm132 = vmand %vm128, %vm131
    %v133 = vsel %vm132, 1, 0
    %v134 = vcvt.s32.f32 %v133
    %135 = vmatprep.subr.mxu0 0.0
    %136 = vmatpush1.msra.mxu0 %v111
    %137 = vmatprep.subr.mxu0 0.0
    %138 = vmatpush1.msra.mxu0 %v112
    %139 = vmatprep.subr.mxu0 0.0
    %140 = vmatpush1.msra.mxu0 %v113
    %141 = vmatprep.subr.mxu0 0.0
    %142 = vmatpush1.msra.mxu0 %v114
    %143 = vmatprep.subr.mxu0 0.0
    %144 = vmatpush1.msra.mxu0 %v115
    %145 = vmatprep.subr.mxu0 0.0
    %146 = vmatpush1.msra.mxu0 %v116
    %147 = vmatprep.subr.mxu0 0.0
    %148 = vmatpush1.msra.mxu0 %v117
    %149 = vmatprep.subr.mxu0 0.0
    %150 = vmatpush1.msra.mxu0 %v118
    %151 = vmatprep.subr.mxu0 0.0
    %152 = vmatpush1.msra.mxu0 %v119
    %153 = vmatprep.subr.mxu0 0.0
    %154 = vmatpush1.msra.mxu0 %v120
    %155 = vmatprep.subr.mxu0 0.0
    %156 = vmatpush1.msra.mxu0 %v121
    %157 = vmatprep.subr.mxu0 0.0
    %158 = vmatpush1.msra.mxu0 %v122
    %159 = vmatprep.subr.mxu0 0.0
    %160 = vmatpush1.msra.mxu0 %v123
    %161 = vmatprep.subr.mxu0 0.0
    %162 = vmatpush1.msra.mxu0 %v124
    %163 = vmatprep.subr.mxu0 0.0
    %164 = vmatpush1.msra.mxu0 %v125
    %165 = vmatprep.subr.mxu0 0.0
    %166 = vmatpush1.msra.mxu0 %v126
    %167 = vmatprep.subr.mxu0 0.0
    %168 = vmatpush1.msra.mxu0 0.0
    %169 = vmatprep.subr.mxu0 0.0
    %170 = vmatpush1.msra.mxu0 0.0
    %171 = vmatprep.subr.mxu0 0.0
    %172 = vmatpush1.msra.mxu0 0.0
    %173 = vmatprep.subr.mxu0 0.0
    %174 = vmatpush1.msra.mxu0 0.0
    %175 = vmatprep.subr.mxu0 0.0
    %176 = vmatpush1.msra.mxu0 0.0
    %177 = vmatprep.subr.mxu0 0.0
    %178 = vmatpush1.msra.mxu0 0.0
    %179 = vmatprep.subr.mxu0 0.0
    %180 = vmatpush1.msra.mxu0 0.0
    %181 = vmatprep.subr.mxu0 0.0
    %182 = vmatpush1.msra.mxu0 0.0
    %183 = vmatprep.subr.mxu0 0.0
    %184 = vmatpush1.msra.mxu0 0.0
    %185 = vmatprep.subr.mxu0 0.0
    %186 = vmatpush1.msra.mxu0 0.0
    %187 = vmatprep.subr.mxu0 0.0
    %188 = vmatpush1.msra.mxu0 0.0
    %189 = vmatprep.subr.mxu0 0.0
    %190 = vmatpush1.msra.mxu0 0.0
    %191 = vmatprep.subr.mxu0 0.0
    %192 = vmatpush1.msra.mxu0 0.0
    %193 = vmatprep.subr.mxu0 0.0
    %194 = vmatpush1.msra.mxu0 0.0
    %195 = vmatprep.subr.mxu0 0.0
    %196 = vmatpush1.msra.mxu0 0.0
    %197 = vmatprep.subr.mxu0 0.0
    %198 = vmatpush1.msra.mxu0 0.0
    %199 = vmatprep.mubr.f32.mxu0 0.0
    %200 = vmatmul.mubr.f32.gmra.mrb[0].mxu0 %v24
    %v201 = vpop.f32.mrb[0].mxu0
    %v202 = vadd.f32 0.0, %v201
    %v203 = vpop.f32.mrb[0].mxu0
    %204 = vdwg.mxu0
    %v205 = vmul.f32 %v202, 0.03125
    %vm206 = vcmask 31744
    %v208 = vsel %vm206, %v205, 0
    %vm210 = vcmask 1043456
    %v212 = vsel %vm210, %v134, 0
    %214 = vmatprep.subr.mxu0 0.0
    %215 = vmatpush1.msra.mxu0 %v212
    %216 = vmatprep.subr.mxu0 0.0
    %217 = vmatpush1.msra.mxu0 0.0
    %218 = vmatprep.subr.mxu0 0.0
    %219 = vmatpush1.msra.mxu0 0.0
    %220 = vmatprep.subr.mxu0 0.0
    %221 = vmatpush1.msra.mxu0 0.0
    %222 = vmatprep.subr.mxu0 0.0
    %223 = vmatpush1.msra.mxu0 0.0
    %224 = vmatprep.subr.mxu0 0.0
    %225 = vmatpush1.msra.mxu0 0.0
    %226 = vmatprep.subr.mxu0 0.0
    %227 = vmatpush1.msra.mxu0 0.0
    %228 = vmatprep.subr.mxu0 0.0
    %229 = vmatpush1.msra.mxu0 0.0
    %230 = vmatprep.subr.mxu0 0.0
    %231 = vmatpush1.msra.mxu0 0.0
    %232 = vmatprep.subr.mxu0 0.0
    %233 = vmatpush1.msra.mxu0 0.0
    %234 = vmatprep.subr.mxu0 0.0
    %235 = vmatpush1.msra.mxu0 0.0
    %236 = vmatprep.subr.mxu0 0.0
    %237 = vmatpush1.msra.mxu0 0.0
    %238 = vmatprep.subr.mxu0 0.0
    %239 = vmatpush1.msra.mxu0 0.0
    %240 = vmatprep.subr.mxu0 0.0
    %241 = vmatpush1.msra.mxu0 0.0
    %242 = vmatprep.subr.mxu0 0.0
    %243 = vmatpush1.msra.mxu0 0.0
    %244 = vmatprep.subr.mxu0 0.0
    %245 = vmatpush1.msra.mxu0 0.0
    %246 = vmatprep.subr.mxu0 0.0
    %247 = vmatpush1.msra.mxu0 0.0
    %248 = vmatprep.subr.mxu0 0.0
    %249 = vmatpush1.msra.mxu0 0.0
    %250 = vmatprep.subr.mxu0 0.0
    %251 = vmatpush1.msra.mxu0 0.0
    %252 = vmatprep.subr.mxu0 0.0
    %253 = vmatpush1.msra.mxu0 0.0
    %254 = vmatprep.subr.mxu0 0.0
    %255 = vmatpush1.msra.mxu0 0.0
    %256 = vmatprep.subr.mxu0 0.0
    %257 = vmatpush1.msra.mxu0 0.0
    %258 = vmatprep.subr.mxu0 0.0
    %259 = vmatpush1.msra.mxu0 0.0
    %260 = vmatprep.subr.mxu0 0.0
    %261 = vmatpush1.msra.mxu0 0.0
    %262 = vmatprep.subr.mxu0 0.0
    %263 = vmatpush1.msra.mxu0 0.0
    %264 = vmatprep.subr.mxu0 0.0
    %265 = vmatpush1.msra.mxu0 0.0
    %266 = vmatprep.subr.mxu0 0.0
    %267 = vmatpush1.msra.mxu0 0.0
    %268 = vmatprep.subr.mxu0 0.0
    %269 = vmatpush1.msra.mxu0 0.0
    %270 = vmatprep.subr.mxu0 0.0
    %271 = vmatpush1.msra.mxu0 0.0
    %272 = vmatprep.subr.mxu0 0.0
    %273 = vmatpush1.msra.mxu0 0.0
    %274 = vmatprep.subr.mxu0 0.0
    %275 = vmatpush1.msra.mxu0 0.0
    %276 = vmatprep.subr.mxu0 0.0
    %277 = vmatpush1.msra.mxu0 0.0
    %278 = vmatprep.mubr.f32.mxu0 0.0
    %279 = vmatmul.mubr.f32.gmra.mrb[0].mxu0 %v208
    %v280 = vpop.f32.mrb[0].mxu0
    %v281 = vadd.f32 0.0, %v280
    %v282 = vpop.f32.mrb[0].mxu0
    %283 = vdwg.mxu0
    %v284 = vsub.f32 %v24, %v281
    %v285 = vmul.f32 %v284, %v284
    %286 = vmatprep.subr.mxu0 0.0
    %287 = vmatpush1.msra.mxu0 %v111
    %288 = vmatprep.subr.mxu0 0.0
    %289 = vmatpush1.msra.mxu0 %v112
    %290 = vmatprep.subr.mxu0 0.0
    %291 = vmatpush1.msra.mxu0 %v113
    %292 = vmatprep.subr.mxu0 0.0
    %293 = vmatpush1.msra.mxu0 %v114
    %294 = vmatprep.subr.mxu0 0.0
    %295 = vmatpush1.msra.mxu0 %v115
    %296 = vmatprep.subr.mxu0 0.0
    %297 = vmatpush1.msra.mxu0 %v116
    %298 = vmatprep.subr.mxu0 0.0
    %299 = vmatpush1.msra.mxu0 %v117
    %300 = vmatprep.subr.mxu0 0.0
    %301 = vmatpush1.msra.mxu0 %v118
    %302 = vmatprep.subr.mxu0 0.0
    %303 = vmatpush1.msra.mxu0 %v119
    %304 = vmatprep.subr.mxu0 0.0
    %305 = vmatpush1.msra.mxu0 %v120
    %306 = vmatprep.subr.mxu0 0.0
    %307 = vmatpush1.msra.mxu0 %v121
    %308 = vmatprep.subr.mxu0 0.0
    %309 = vmatpush1.msra.mxu0 %v122
    %310 = vmatprep.subr.mxu0 0.0
    %311 = vmatpush1.msra.mxu0 %v123
    %312 = vmatprep.subr.mxu0 0.0
    %313 = vmatpush1.msra.mxu0 %v124
    %314 = vmatprep.subr.mxu0 0.0
    %315 = vmatpush1.msra.mxu0 %v125
    %316 = vmatprep.subr.mxu0 0.0
    %317 = vmatpush1.msra.mxu0 %v126
    %318 = vmatprep.subr.mxu0 0.0
    %319 = vmatpush1.msra.mxu0 0.0
    %320 = vmatprep.subr.mxu0 0.0
    %321 = vmatpush1.msra.mxu0 0.0
    %322 = vmatprep.subr.mxu0 0.0
    %323 = vmatpush1.msra.mxu0 0.0
    %324 = vmatprep.subr.mxu0 0.0
    %325 = vmatpush1.msra.mxu0 0.0
    %326 = vmatprep.subr.mxu0 0.0
    %327 = vmatpush1.msra.mxu0 0.0
    %328 = vmatprep.subr.mxu0 0.0
    %329 = vmatpush1.msra.mxu0 0.0
    %330 = vmatprep.subr.mxu0 0.0
    %331 = vmatpush1.msra.mxu0 0.0
    %332 = vmatprep.subr.mxu0 0.0
    %333 = vmatpush1.msra.mxu0 0.0
    %334 = vmatprep.subr.mxu0 0.0
    %335 = vmatpush1.msra.mxu0 0.0
    %336 = vmatprep.subr.mxu0 0.0
    %337 = vmatpush1.msra.mxu0 0.0
    %338 = vmatprep.subr.mxu0 0.0
    %339 = vmatpush1.msra.mxu0 0.0
    %340 = vmatprep.subr.mxu0 0.0
    %341 = vmatpush1.msra.mxu0 0.0
    %342 = vmatprep.subr.mxu0 0.0
    %343 = vmatpush1.msra.mxu0 0.0
    %344 = vmatprep.subr.mxu0 0.0
    %345 = vmatpush1.msra.mxu0 0.0
    %346 = vmatprep.subr.mxu0 0.0
    %347 = vmatpush1.msra.mxu0 0.0
    %348 = vmatprep.subr.mxu0 0.0
    %349 = vmatpush1.msra.mxu0 0.0
    %350 = vmatprep.mubr.f32.mxu0 0.0
    %351 = vmatmul.mubr.f32.gmra.mrb[0].mxu0 %v285
    %v352 = vpop.f32.mrb[0].mxu0
    %v353 = vadd.f32 0.0, %v352
    %v354 = vpop.f32.mrb[0].mxu0
    %355 = vdwg.mxu0
    %v356 = vmul.f32 %v353, 0.03125
    %v357 = vadd.f32 %v356, 1e-05
    %v358 = vrsqrt.pop %v357
    %v360 = vsel %vm206, %v358, 0
    %362 = vmatprep.subr.mxu0 0.0
    %363 = vmatpush1.msra.mxu0 %v212
    %364 = vmatprep.subr.mxu0 0.0
    %365 = vmatpush1.msra.mxu0 0.0
    %366 = vmatprep.subr.mxu0 0.0
    %367 = vmatpush1.msra.mxu0 0.0
    %368 = vmatprep.subr.mxu0 0.0
    %369 = vmatpush1.msra.mxu0 0.0
    %370 = vmatprep.subr.mxu0 0.0
    %371 = vmatpush1.msra.mxu0 0.0
    %372 = vmatprep.subr.mxu0 0.0
    %373 = vmatpush1.msra.mxu0 0.0
    %374 = vmatprep.subr.mxu0 0.0
    %375 = vmatpush1.msra.mxu0 0.0
    %376 = vmatprep.subr.mxu0 0.0
    %377 = vmatpush1.msra.mxu0 0.0
    %378 = vmatprep.subr.mxu0 0.0
    %379 = vmatpush1.msra.mxu0 0.0
    %380 = vmatprep.subr.mxu0 0.0
    %381 = vmatpush1.msra.mxu0 0.0
    %382 = vmatprep.subr.mxu0 0.0
    %383 = vmatpush1.msra.mxu0 0.0
    %384 = vmatprep.subr.mxu0 0.0
    %385 = vmatpush1.msra.mxu0 0.0
    %386 = vmatprep.subr.mxu0 0.0
    %387 = vmatpush1.msra.mxu0 0.0
    %388 = vmatprep.subr.mxu0 0.0
    %389 = vmatpush1.msra.mxu0 0.0
    %390 = vmatprep.subr.mxu0 0.0
    %391 = vmatpush1.msra.mxu0 0.0
    %392 = vmatprep.subr.mxu0 0.0
    %393 = vmatpush1.msra.mxu0 0.0
    %394 = vmatprep.subr.mxu0 0.0
    %395 = vmatpush1.msra.mxu0 0.0
    %396 = vmatprep.subr.mxu0 0.0
    %397 = vmatpush1.msra.mxu0 0.0
    %398 = vmatprep.subr.mxu0 0.0
    %399 = vmatpush1.msra.mxu0 0.0
    %400 = vmatprep.subr.mxu0 0.0
    %401 = vmatpush1.msra.mxu0 0.0
    %402 = vmatprep.subr.mxu0 0.0
    %403 = vmatpush1.msra.mxu0 0.0
    %404 = vmatprep.subr.mxu0 0.0
    %405 = vmatpush1.msra.mxu0 0.0
    %406 = vmatprep.subr.mxu0 0.0
    %407 = vmatpush1.msra.mxu0 0.0
    %408 = vmatprep.subr.mxu0 0.0
    %409 = vmatpush1.msra.mxu0 0.0
    %410 = vmatprep.subr.mxu0 0.0
    %411 = vmatpush1.msra.mxu0 0.0
    %412 = vmatprep.subr.mxu0 0.0
    %413 = vmatpush1.msra.mxu0 0.0
    %414 = vmatprep.subr.mxu0 0.0
    %415 = vmatpush1.msra.mxu0 0.0
    %416 = vmatprep.subr.mxu0 0.0
    %417 = vmatpush1.msra.mxu0 0.0
    %418 = vmatprep.subr.mxu0 0.0
    %419 = vmatpush1.msra.mxu0 0.0
    %420 = vmatprep.subr.mxu0 0.0
    %421 = vmatpush1.msra.mxu0 0.0
    %422 = vmatprep.subr.mxu0 0.0
    %423 = vmatpush1.msra.mxu0 0.0
    %424 = vmatprep.subr.mxu0 0.0
    %425 = vmatpush1.msra.mxu0 0.0
    %426 = vmatprep.mubr.f32.mxu0 0.0
    %427 = vmatmul.mubr.f32.gmra.mrb[0].mxu0 %v360
    %v428 = vpop.f32.mrb[0].mxu0
    %v429 = vadd.f32 0.0, %v428
    %v430 = vpop.f32.mrb[0].mxu0
    %431 = vdwg.mxu0
    %v432 = vmul.f32 %v284, %v429
    %v433 = vld [vmem:[%s1] sm:$0x1]
    %v435 = vlaneseq
    %v436 = vshrl.u32 %v435, 7
    %v437 = vsub.s32 0, %v436
    %v438 = vrot.slane %v433, %v437
    %v440 = vmul.f32 %v432, %v438
    %441 = vst [vmem:[#allocation5] sm:$0xf] %v440
    // Predicated region
    $region14: #{tpu_custom_call.1} parent=1 // pred_check
      _
    $region15: #{tpu_custom_call.1} parent=1 // pred_check_branch
      %443 = sbr.rel (0) target = $region17
    $region16: #{tpu_custom_call.1} parent=1 // pred_region
      %s445 = ssub.s32 64, 64
      %446 = vsyncadd [#allocation4], %s445
      %s448 = sshll.u32 [#allocation5], 4
      %s449 = int_to_ptr.vmem [resolvable:$true] %s448
      %451 = dma.vmem_to_hbm [thread:$0]  %s449, 64, %s2, [#allocation4]
    $region17: #{tpu_custom_call.1} parent=1 // pred_fallthru
      _
    // Predicated region
    $region18: #{tpu_custom_call.1} parent=1 // pred_check
      _
    $region19: #{tpu_custom_call.1} parent=1 // pred_check_branch
      %453 = sbr.rel (0) target = $region21
    $region20: #{tpu_custom_call.1} parent=1 // pred_region
      %454 = dma.done [#allocation4], 64
    $region21: #{tpu_custom_call.1} parent=1 // pred_fallthru
      _
    %455 = vsyncpa [#allocation3], 1
    %456 = vsyncpa [#allocation4], 1

</llo_original>
